<compile_context>
chip_gen: v6e
topology: v6e:2x2x1
jax: 0.10.0
libtpu: 0.0.40
codegen_flags: <defaults>
</compile_context>

<pallas_src>
import jax
import jax.numpy as jnp
from jax import lax
from jax.experimental import pallas as pl
from jax.experimental.pallas import tpu as pltpu

LANES = 128
SUBLANES = 8
SLAB_ROWS = 64                                   # in-kernel slab: 8 vregs/input (f32)
BYTES_PER_INPUT_PER_BUFFER = 4 * 1024 * 1024     # ~4 MiB/input/pipeline buffer
VMEM_LIMIT_BYTES = 32 * 1024 * 1024              # safe on v5e/v6e/v7x


def _make_dice_kernel(block_rows: int, rows: int, n_blocks: int):
    """Builds a kernel producing (3, 8, 128) lane/sublane-parallel partials:
       out[0] = partial sum(p*t), out[1] = partial sum(p), out[2] = partial sum(t).
    """
    needs_mask = n_blocks * block_rows > rows    # only the last block is ragged
    n_slabs = block_rows // SLAB_ROWS
    tail_rows = block_rows % SLAB_ROWS           # nonzero only in single-block case

    def kernel(p_ref, t_ref, o_ref, i_acc, a_acc, b_acc):
        k = pl.program_id(0)
        last = pl.num_programs(0) - 1

        @pl.when(k == 0)
        def _init():
            i_acc[...] = jnp.zeros_like(i_acc)
            a_acc[...] = jnp.zeros_like(a_acc)
            b_acc[...] = jnp.zeros_like(b_acc)

        def slab_update(row0, slab_rows, masked):
            p = p_ref[pl.ds(row0, slab_rows), :].astype(jnp.float32)
            t = t_ref[pl.ds(row0, slab_rows), :].astype(jnp.float32)
            if masked:
                rid = (k * block_rows + row0
                       + lax.broadcasted_iota(jnp.int32, (slab_rows, LANES), 0))
                valid = rid < rows
                p = jnp.where(valid, p, 0.0)
                t = jnp.where(valid, t, 0.0)
            pt = p * t
            if slab_rows % SUBLANES == 0 and slab_rows > SUBLANES:
                f = slab_rows // SUBLANES
                # Pure VPU vreg adds; no cross-lane/sublane work on the hot path.
                i_acc[...] += pt.reshape(f, SUBLANES, LANES).sum(axis=0)
                a_acc[...] += p.reshape(f, SUBLANES, LANES).sum(axis=0)
                b_acc[...] += t.reshape(f, SUBLANES, LANES).sum(axis=0)
            elif slab_rows == SUBLANES:
                i_acc[...] += pt
                a_acc[...] += p
                b_acc[...] += t
            else:
                # Ragged (<8 or non-multiple-of-8) slab: runs at most once per call.
                i_acc[0:1, :] += pt.sum(axis=0, keepdims=True)
                a_acc[0:1, :] += p.sum(axis=0, keepdims=True)
                b_acc[0:1, :] += t.sum(axis=0, keepdims=True)

        def process_block(masked):
            if n_slabs > 0:
                def body(s, carry):
                    row0 = pl.multiple_of(s * SLAB_ROWS, SLAB_ROWS)
                    slab_update(row0, SLAB_ROWS, masked)
                    return carry
                lax.fori_loop(0, n_slabs, body, 0)
            if tail_rows:
                slab_update(n_slabs * SLAB_ROWS, tail_rows, masked)

        if needs_mask:
            @pl.when(k != last)
            def _bulk():
                process_block(False)

            @pl.when(k == last)
            def _ragged():
                process_block(True)
        else:
            process_block(False)

        @pl.when(k == last)
        def _finalize():
            o_ref[0, :, :] = i_acc[...]
            o_ref[1, :, :] = a_acc[...]
            o_ref[2, :, :] = b_acc[...]

    return kernel


def _dice_partial_sums(p2, t2):
    """p2, t2: (rows, 128) arrays (any dtype). Returns (3,) f32 sums."""
    rows = p2.shape[0]
    itemsize = max(jnp.dtype(p2.dtype).itemsize, jnp.dtype(t2.dtype).itemsize)

    budget_rows = BYTES_PER_INPUT_PER_BUFFER // (LANES * itemsize)
    budget_rows = max(SLAB_ROWS, (budget_rows // SLAB_ROWS) * SLAB_ROWS)
    if rows <= budget_rows:
        block_rows = rows           # single (possibly ragged) block, full extent
        n_blocks = 1
    else:
        block_rows = budget_rows    # multiple of SLAB_ROWS (hence of 8)
        n_blocks = pl.cdiv(rows, block_rows)

    kernel = _make_dice_kernel(block_rows, rows, n_blocks)

    in_bytes = rows * LANES * (jnp.dtype(p2.dtype).itemsize
                               + jnp.dtype(t2.dtype).itemsize)
    cost = pl.CostEstimate(
        flops=3 * rows * LANES,
        transcendentals=0,
        bytes_accessed=in_bytes + 3 * SUBLANES * LANES * 4,
    )

    partials = pl.pallas_call(
        kernel,
        out_shape=jax.ShapeDtypeStruct((3, SUBLANES, LANES), jnp.float32),
        grid_spec=pltpu.PrefetchScalarGridSpec(
            num_scalar_prefetch=0,
            grid=(n_blocks,),
            in_specs=[
                pl.BlockSpec((block_rows, LANES), lambda k: (k, 0)),
                pl.BlockSpec((block_rows, LANES), lambda k: (k, 0)),
            ],
            out_specs=pl.BlockSpec((3, SUBLANES, LANES), lambda k: (0, 0, 0)),
            scratch_shapes=[
                pltpu.VMEM((SUBLANES, LANES), jnp.float32),  # sum(p*t) partials
                pltpu.VMEM((SUBLANES, LANES), jnp.float32),  # sum(p)   partials
                pltpu.VMEM((SUBLANES, LANES), jnp.float32),  # sum(t)   partials
            ],
        ),
        compiler_params=pltpu.CompilerParams(
            dimension_semantics=("arbitrary",),      # sequential reduction axis
            vmem_limit_bytes=VMEM_LIMIT_BYTES,
        ),
        cost_estimate=cost,
    )(p2, t2)

    # Single cross-sublane/lane reduction, done once on a tiny (3,8,128) array.
    return jnp.sum(partials, axis=(1, 2))


def dice_loss(pred: jax.Array, target: jax.Array, smooth: float = 1.0) -> jax.Array:
    """Pallas TPU implementation of DiceLoss.forward (returns a scalar f32)."""
    assert pred.shape == target.shape, "pred and target must have the same shape"

    # Flatten; keep original dtypes so narrow dtypes stream narrow over HBM
    # (the f32 cast happens inside the kernel, in VMEM).
    p = pred.reshape(-1)
    t = target.reshape(-1)
    n = p.shape[0]
    assert n > 0, "empty input"

    n_aligned = (n // LANES) * LANES
    sums = jnp.zeros((3,), jnp.float32)

    if n_aligned:
        # Aligned prefix: no jnp.pad, no HBM copy in the common n % 128 == 0 case.
        p2 = (p if n_aligned == n else p[:n_aligned]).reshape(-1, LANES)
        t2 = (t if n_aligned == n else t[:n_aligned]).reshape(-1, LANES)
        sums = sums + _dice_partial_sums(p2, t2)

    if n_aligned != n:
        # <=127-element lane remainder: summed directly in JAX (tiny).
        pr = p[n_aligned:].astype(jnp.float32)
        tr = t[n_aligned:].astype(jnp.float32)
        sums = sums + jnp.stack([jnp.sum(pr * tr), jnp.sum(pr), jnp.sum(tr)])

    s = jnp.float32(smooth)
    return 1.0 - (2.0 * sums[0] + s) / (sums[1] + sums[2] + s)


def dice_loss_ref(pred, target, smooth=1.0):
    iflat = pred.reshape(-1).astype(jnp.float32)
    tflat = target.reshape(-1).astype(jnp.float32)
    inter = jnp.sum(iflat * tflat)
    return 1.0 - (2.0 * inter + smooth) / (jnp.sum(iflat) + jnp.sum(tflat) + smooth)


if __name__ == "__main__":
    key = jax.random.PRNGKey(0)
    k1, k2 = jax.random.split(key)

    # NCHW-style inputs, as would be fed from a segmentation head.
    pred = jax.nn.sigmoid(jax.random.normal(k1, (2, 4, 16, 16), dtype=jnp.float32))
    target = (jax.random.uniform(k2, (2, 4, 16, 16)) > 0.5).astype(jnp.float32)

    loss = jax.block_until_ready(dice_loss(pred, target, smooth=1.0))
    ref = jax.block_until_ready(dice_loss_ref(pred, target, smooth=1.0))

    assert jnp.allclose(loss, ref, atol=1e-5, rtol=1e-5), (loss, ref)
    print("KERNEL_OK")
</pallas_src>

<mosaic_0001>
module attributes {stable_mosaic.version = 11 : i64} {
  func.func @kernel(%arg0: i32, %arg1: memref<16x128xf32, #tpu.memory_space<vmem>>, %arg2: memref<16x128xf32, #tpu.memory_space<vmem>>, %arg3: memref<3x8x128xf32, #tpu.memory_space<vmem>>, %arg4: memref<8x128xf32, #tpu.memory_space<vmem>>, %arg5: memref<8x128xf32, #tpu.memory_space<vmem>>, %arg6: memref<8x128xf32, #tpu.memory_space<vmem>>) attributes {dimension_semantics = [#tpu.dimension_semantics<arbitrary>], iteration_bounds = array<i64: 1>, scalar_prefetch = 0 : i64, scratch_operands = 3 : i64, tpu.core_type = #tpu.core_type<tc>, window_params = [{transform_indices = @transform_0, window_bounds = array<i64: 16, 128>}, {transform_indices = @transform_1, window_bounds = array<i64: 16, 128>}, {pipeline_mode = #tpu.pipeline_mode<synchronous>, transform_indices = @transform_2, window_bounds = array<i64: 3, 8, 128>}]} {
    %c0_i32 = arith.constant 0 : i32
    %0 = arith.cmpi eq, %arg0, %c0_i32 : i32
    %1 = arith.extui %0 : i1 to i32
    %c0_i32_0 = arith.constant 0 : i32
    %2 = arith.cmpi ne, %1, %c0_i32_0 : i32
    scf.if %2 {
      %cst_20 = arith.constant 0.000000e+00 : f32
      %24 = vector.broadcast %cst_20 : f32 to vector<8x128xf32>
      %c0_21 = arith.constant 0 : index
      %c0_22 = arith.constant 0 : index
      %25 = vector.load %arg4[%c0_21, %c0_22] : memref<8x128xf32, #tpu.memory_space<vmem>>, vector<8x128xf32>
      tpu.vector_store %arg4[%c0_21, %c0_22], %24 {strides = array<i32>} : memref<8x128xf32, #tpu.memory_space<vmem>>, vector<8x128xf32>,
      %cst_23 = arith.constant 0.000000e+00 : f32
      %26 = vector.broadcast %cst_23 : f32 to vector<8x128xf32>
      %c0_24 = arith.constant 0 : index
      %c0_25 = arith.constant 0 : index
      %27 = vector.load %arg5[%c0_24, %c0_25] : memref<8x128xf32, #tpu.memory_space<vmem>>, vector<8x128xf32>
      tpu.vector_store %arg5[%c0_24, %c0_25], %26 {strides = array<i32>} : memref<8x128xf32, #tpu.memory_space<vmem>>, vector<8x128xf32>,
      %cst_26 = arith.constant 0.000000e+00 : f32
      %28 = vector.broadcast %cst_26 : f32 to vector<8x128xf32>
      %c0_27 = arith.constant 0 : index
      %c0_28 = arith.constant 0 : index
      %29 = vector.load %arg6[%c0_27, %c0_28] : memref<8x128xf32, #tpu.memory_space<vmem>>, vector<8x128xf32>
      tpu.vector_store %arg6[%c0_27, %c0_28], %28 {strides = array<i32>} : memref<8x128xf32, #tpu.memory_space<vmem>>, vector<8x128xf32>,
    } else {
    }
    %c0 = arith.constant 0 : index
    %c0_1 = arith.constant 0 : index
    %3 = vector.load %arg1[%c0, %c0_1] : memref<16x128xf32, #tpu.memory_space<vmem>>, vector<16x128xf32>
    %c0_2 = arith.constant 0 : index
    %c0_3 = arith.constant 0 : index
    %4 = vector.load %arg2[%c0_2, %c0_3] : memref<16x128xf32, #tpu.memory_space<vmem>>, vector<16x128xf32>
    %5 = arith.mulf %3, %4 : vector<16x128xf32>
    %c0_4 = arith.constant 0 : index
    %c0_5 = arith.constant 0 : index
    %6 = vector.load %arg4[%c0_4, %c0_5] : memref<8x128xf32, #tpu.memory_space<vmem>>, vector<8x128xf32>
    %7 = vector.shape_cast %5 : vector<16x128xf32> to vector<2x8x128xf32>
    %cst = arith.constant dense<0.000000e+00> : vector<8x128xf32>
    %8 = vector.multi_reduction <add>, %7, %cst [0] : vector<2x8x128xf32> to vector<8x128xf32>
    %9 = arith.addf %6, %8 : vector<8x128xf32>
    %c0_6 = arith.constant 0 : index
    %c0_7 = arith.constant 0 : index
    %10 = vector.load %arg4[%c0_6, %c0_7] : memref<8x128xf32, #tpu.memory_space<vmem>>, vector<8x128xf32>
    tpu.vector_store %arg4[%c0_6, %c0_7], %9 {strides = array<i32>} : memref<8x128xf32, #tpu.memory_space<vmem>>, vector<8x128xf32>,
    %c0_8 = arith.constant 0 : index
    %c0_9 = arith.constant 0 : index
    %11 = vector.load %arg5[%c0_8, %c0_9] : memref<8x128xf32, #tpu.memory_space<vmem>>, vector<8x128xf32>
    %12 = vector.shape_cast %3 : vector<16x128xf32> to vector<2x8x128xf32>
    %cst_10 = arith.constant dense<0.000000e+00> : vector<8x128xf32>
    %13 = vector.multi_reduction <add>, %12, %cst_10 [0] : vector<2x8x128xf32> to vector<8x128xf32>
    %14 = arith.addf %11, %13 : vector<8x128xf32>
    %c0_11 = arith.constant 0 : index
    %c0_12 = arith.constant 0 : index
    %15 = vector.load %arg5[%c0_11, %c0_12] : memref<8x128xf32, #tpu.memory_space<vmem>>, vector<8x128xf32>
    tpu.vector_store %arg5[%c0_11, %c0_12], %14 {strides = array<i32>} : memref<8x128xf32, #tpu.memory_space<vmem>>, vector<8x128xf32>,
    %c0_13 = arith.constant 0 : index
    %c0_14 = arith.constant 0 : index
    %16 = vector.load %arg6[%c0_13, %c0_14] : memref<8x128xf32, #tpu.memory_space<vmem>>, vector<8x128xf32>
    %17 = vector.shape_cast %4 : vector<16x128xf32> to vector<2x8x128xf32>
    %cst_15 = arith.constant dense<0.000000e+00> : vector<8x128xf32>
    %18 = vector.multi_reduction <add>, %17, %cst_15 [0] : vector<2x8x128xf32> to vector<8x128xf32>
    %19 = arith.addf %16, %18 : vector<8x128xf32>
    %c0_16 = arith.constant 0 : index
    %c0_17 = arith.constant 0 : index
    %20 = vector.load %arg6[%c0_16, %c0_17] : memref<8x128xf32, #tpu.memory_space<vmem>>, vector<8x128xf32>
    tpu.vector_store %arg6[%c0_16, %c0_17], %19 {strides = array<i32>} : memref<8x128xf32, #tpu.memory_space<vmem>>, vector<8x128xf32>,
    %c0_i32_18 = arith.constant 0 : i32
    %21 = arith.cmpi eq, %arg0, %c0_i32_18 : i32
    %22 = arith.extui %21 : i1 to i32
    %c0_i32_19 = arith.constant 0 : i32
    %23 = arith.cmpi ne, %22, %c0_i32_19 : i32
    scf.if %23 {
      %c0_20 = arith.constant 0 : index
      %c0_21 = arith.constant 0 : index
      %24 = vector.load %arg4[%c0_20, %c0_21] : memref<8x128xf32, #tpu.memory_space<vmem>>, vector<8x128xf32>
      %c0_22 = arith.constant 0 : index
      %c0_23 = arith.constant 0 : index
      %c0_24 = arith.constant 0 : index
      %25 = vector.load %arg3[%c0_22, %c0_23, %c0_24] : memref<3x8x128xf32, #tpu.memory_space<vmem>>, vector<1x8x128xf32>
      %26 = vector.shape_cast %25 : vector<1x8x128xf32> to vector<8x128xf32>
      %27 = vector.shape_cast %24 : vector<8x128xf32> to vector<1x8x128xf32>
      tpu.vector_store %arg3[%c0_22, %c0_23, %c0_24], %27 {strides = array<i32>} : memref<3x8x128xf32, #tpu.memory_space<vmem>>, vector<1x8x128xf32>,
      %c0_25 = arith.constant 0 : index
      %c0_26 = arith.constant 0 : index
      %28 = vector.load %arg5[%c0_25, %c0_26] : memref<8x128xf32, #tpu.memory_space<vmem>>, vector<8x128xf32>
      %c1 = arith.constant 1 : index
      %c0_27 = arith.constant 0 : index
      %c0_28 = arith.constant 0 : index
      %29 = vector.load %arg3[%c1, %c0_27, %c0_28] : memref<3x8x128xf32, #tpu.memory_space<vmem>>, vector<1x8x128xf32>
      %30 = vector.shape_cast %29 : vector<1x8x128xf32> to vector<8x128xf32>
      %31 = vector.shape_cast %28 : vector<8x128xf32> to vector<1x8x128xf32>
      tpu.vector_store %arg3[%c1, %c0_27, %c0_28], %31 {strides = array<i32>} : memref<3x8x128xf32, #tpu.memory_space<vmem>>, vector<1x8x128xf32>,
      %c0_29 = arith.constant 0 : index
      %c0_30 = arith.constant 0 : index
      %32 = vector.load %arg6[%c0_29, %c0_30] : memref<8x128xf32, #tpu.memory_space<vmem>>, vector<8x128xf32>
      %c2 = arith.constant 2 : index
      %c0_31 = arith.constant 0 : index
      %c0_32 = arith.constant 0 : index
      %33 = vector.load %arg3[%c2, %c0_31, %c0_32] : memref<3x8x128xf32, #tpu.memory_space<vmem>>, vector<1x8x128xf32>
      %34 = vector.shape_cast %33 : vector<1x8x128xf32> to vector<8x128xf32>
      %35 = vector.shape_cast %32 : vector<8x128xf32> to vector<1x8x128xf32>
      tpu.vector_store %arg3[%c2, %c0_31, %c0_32], %35 {strides = array<i32>} : memref<3x8x128xf32, #tpu.memory_space<vmem>>, vector<1x8x128xf32>,
    } else {
    }
    return
  }
  func.func @transform_0(%arg0: i32) -> (i32, i32) {
    %c0_i32 = arith.constant 0 : i32
    %c0_i32_0 = arith.constant 0 : i32
    return %arg0, %c0_i32 : i32, i32
  }
  func.func @transform_1(%arg0: i32) -> (i32, i32) {
    %c0_i32 = arith.constant 0 : i32
    %c0_i32_0 = arith.constant 0 : i32
    return %arg0, %c0_i32 : i32, i32
  }
  func.func @transform_2(%arg0: i32) -> (i32, i32, i32) {
    %c0_i32 = arith.constant 0 : i32
    %c0_i32_0 = arith.constant 0 : i32
    %c0_i32_1 = arith.constant 0 : i32
    %c0_i32_2 = arith.constant 0 : i32
    return %c0_i32, %c0_i32_0, %c0_i32_1 : i32, i32, i32
  }
}

</mosaic_0001>

<llo_original>
// kernel: tpu_custom_call.1
$region0: #{tpu_custom_call.1}
  #allocation0 [shape = 'u32[]', space=smem, size = 0x4, offset = 0x4, fixed_abs, tag = 'smem constant byte address 0x4 - core index']
  #allocation1 [shape = 'u32[144,128]{1,0:T(1,128)}', space=vmem, size = 0x12000, scoped, tag = 'internal scratch']
  #allocation2 [shape = 'f32[8,128]{1,0:T(8,128)}', space=vmem, size = 0x1000, scoped, tag = 'scratch operand']
  #allocation3 [shape = 'f32[8,128]{1,0:T(8,128)}', space=vmem, size = 0x1000, scoped, tag = 'scratch operand']
  #allocation4 [shape = 'f32[8,128]{1,0:T(8,128)}', space=vmem, size = 0x1000, scoped, tag = 'scratch operand']
  %s0 = inlined_call_operand.hbm [shape: f32[16,128], index: 0, kind: input, shape index: {}]
  %s1 = inlined_call_operand.hbm [shape: f32[16,128], index: 1, kind: input, shape index: {}]
  %s2 = inlined_call_operand.hbm [shape: f32[3,8,128], index: 2, kind: output, shape index: {}]
  %s3 = sld [smem:[#allocation0]]
  $region34: #{tpu_custom_call.1} parent=0
    _
  %s5 = ssub.s32 1, %s3
  %s6 = scalar_select 0, %s5, %s3
  $region1: #{tpu_custom_call.1} parent=0
    #allocation5 [shape = 'u8[8192]{0}', space=vmem, size = 0x2000, scoped, tag = 'input window, operand 0, single buffered']
    #allocation6 [shape = 's32[1]{0}', space=sflag, size = 0x4, scoped, tag = 'scoped memory for tpu_custom_call.1']
    #allocation7 [shape = 's32[1]{0}', space=sflag, size = 0x4, scoped, tag = 'scoped memory for tpu_custom_call.1']
    #allocation8 [shape = 'u8[8192]{0}', space=vmem, size = 0x2000, scoped, tag = 'input window, operand 1, single buffered']
    #allocation9 [shape = 's32[1]{0}', space=sflag, size = 0x4, scoped, tag = 'scoped memory for tpu_custom_call.1']
    #allocation10 [shape = 'u8[12288]{0}', space=vmem, size = 0x3000, scoped, tag = 'output window, operand 0, single buffered']
    %7 = vsyncpa [#allocation6], 0
    %8 = vsyncpa [#allocation9], 0
    %9 = vsyncpa [#allocation7], 0
    // Predicated region
    $region2: #{tpu_custom_call.1} parent=1 // pred_check
      _
    $region3: #{tpu_custom_call.1} parent=1 // pred_check_branch
      %11 = sbr.rel (0) target = $region5
    $region4: #{tpu_custom_call.1} parent=1 // pred_region
      %s13 = ssub.s32 256, 256
      %14 = vsyncadd [#allocation6], %s13
      %s15 = sshll.u32 [#allocation5], 4
      %s16 = int_to_ptr.vmem [resolvable:$true] %s15
      %21 = dma.hbm_to_vmem [thread:$0]  %s0, 256, %s16, [#allocation6], 128, 128, 8
    $region5: #{tpu_custom_call.1} parent=1 // pred_fallthru
      _
    // Predicated region
    $region6: #{tpu_custom_call.1} parent=1 // pred_check
      _
    $region7: #{tpu_custom_call.1} parent=1 // pred_check_branch
      %23 = sbr.rel (0) target = $region9
    $region8: #{tpu_custom_call.1} parent=1 // pred_region
      %s25 = ssub.s32 256, 256
      %26 = vsyncadd [#allocation9], %s25
      %s27 = sshll.u32 [#allocation8], 4
      %s28 = int_to_ptr.vmem [resolvable:$true] %s27
      %33 = dma.hbm_to_vmem [thread:$0]  %s1, 256, %s28, [#allocation9], 128, 128, 8
    $region9: #{tpu_custom_call.1} parent=1 // pred_fallthru
      _
    // Predicated region
    $region10: #{tpu_custom_call.1} parent=1 // pred_check
      _
    $region11: #{tpu_custom_call.1} parent=1 // pred_check_branch
      %35 = sbr.rel (0) target = $region13
    $region12: #{tpu_custom_call.1} parent=1 // pred_region
      %36 = dma.done [#allocation6], 256
    $region13: #{tpu_custom_call.1} parent=1 // pred_fallthru
      _
    // Predicated region
    $region14: #{tpu_custom_call.1} parent=1 // pred_check
      _
    $region15: #{tpu_custom_call.1} parent=1 // pred_check_branch
      %38 = sbr.rel (0) target = $region17
    $region16: #{tpu_custom_call.1} parent=1 // pred_region
      %39 = dma.done [#allocation9], 256
    $region17: #{tpu_custom_call.1} parent=1 // pred_fallthru
      _
    %p40 = scmp.eq.s32.totalorder 0, 0
    // Predicated region
    $region18: #{tpu_custom_call.1} parent=1 // pred_check
      %p41 = pneg %p40
    $region19: #{tpu_custom_call.1} parent=1 // pred_check_branch
      %43 = sbr.rel (%p41) target = $region21
    $region20: #{tpu_custom_call.1} parent=1 // pred_region
      %44 = vst [vmem:[#allocation2] sm:$0xff] 0.0
      %45 = vst [vmem:[#allocation3] sm:$0xff] 0.0
      %46 = vst [vmem:[#allocation4] sm:$0xff] 0.0
    $region21: #{tpu_custom_call.1} parent=1 // pred_fallthru
      _
    %v47 = vld [vmem:[#allocation5] sm:$0xff]
    %v48 = vld [vmem:[#allocation5 + $0x8] sm:$0xff]
    %v49 = vld [vmem:[#allocation8] sm:$0xff]
    %v50 = vld [vmem:[#allocation8 + $0x8] sm:$0xff]
    %v51 = vmul.f32 %v47, %v49
    %v52 = vmul.f32 %v48, %v50
    %v53 = vld [vmem:[#allocation2] sm:$0xff]
    %v54 = vadd.f32 %v51, %v52
    %v55 = vadd.f32 %v53, %v54
    %56 = vst [vmem:[#allocation2] sm:$0xff] %v55
    %v57 = vld [vmem:[#allocation3] sm:$0xff]
    %v58 = vadd.f32 %v47, %v48
    %v59 = vadd.f32 %v57, %v58
    %60 = vst [vmem:[#allocation3] sm:$0xff] %v59
    %v61 = vld [vmem:[#allocation4] sm:$0xff]
    %v62 = vadd.f32 %v49, %v50
    %v63 = vadd.f32 %v61, %v62
    %64 = vst [vmem:[#allocation4] sm:$0xff] %v63
    // Predicated region
    $region22: #{tpu_custom_call.1} parent=1 // pred_check
      %p65 = pneg %p40
    $region23: #{tpu_custom_call.1} parent=1 // pred_check_branch
      %67 = sbr.rel (%p65) target = $region25
    $region24: #{tpu_custom_call.1} parent=1 // pred_region
      %v68 = vld [vmem:[#allocation2] sm:$0xff]
      %69 = vst [vmem:[#allocation10] sm:$0xff] %v68
      %v70 = vld [vmem:[#allocation3] sm:$0xff]
      %s71 = scalar_lea.vmem [#allocation10], 8
      %72 = vst [vmem:[%s71] sm:$0xff] %v70
      %v73 = vld [vmem:[#allocation4] sm:$0xff]
      %s74 = scalar_lea.vmem [#allocation10], 16
      %75 = vst [vmem:[%s74] sm:$0xff] %v73
    $region25: #{tpu_custom_call.1} parent=1 // pred_fallthru
      _
    // Predicated region
    $region26: #{tpu_custom_call.1} parent=1 // pred_check
      _
    $region27: #{tpu_custom_call.1} parent=1 // pred_check_branch
      %77 = sbr.rel (0) target = $region29
    $region28: #{tpu_custom_call.1} parent=1 // pred_region
      %s79 = ssub.s32 384, 384
      %80 = vsyncadd [#allocation7], %s79
      %s81 = sshll.u32 [#allocation10], 4
      %s82 = int_to_ptr.vmem [resolvable:$true] %s81
      %87 = dma.vmem_to_hbm [thread:$0]  %s82, 384, %s2, [#allocation7], 128, 128, 8
    $region29: #{tpu_custom_call.1} parent=1 // pred_fallthru
      _
    // Predicated region
    $region30: #{tpu_custom_call.1} parent=1 // pred_check
      _
    $region31: #{tpu_custom_call.1} parent=1 // pred_check_branch
      %89 = sbr.rel (0) target = $region33
    $region32: #{tpu_custom_call.1} parent=1 // pred_region
      %90 = dma.done [#allocation7], 384
    $region33: #{tpu_custom_call.1} parent=1 // pred_fallthru
      _
    %91 = vsyncpa [#allocation6], 1
    %92 = vsyncpa [#allocation9], 1
    %93 = vsyncpa [#allocation7], 1

</llo_original>
